<compile_context>
chip_gen: v6e
topology: v6e:2x2x1
jax: 0.10.0
libtpu: 0.0.40
codegen_flags: <defaults>
</compile_context>

<pallas_src>
import jax
import jax.numpy as jnp
from jax.experimental import pallas as pl
from jax.experimental.pallas import tpu as pltpu


def _round_up(n, m):
    return ((n + m - 1) // m) * m


def _lstm_kernel(x_ref, wih_ref, whh_ref, b_ref, h_ref, c_ref):
    """One (batch block, time chunk): TILE_T unrolled LSTM timesteps.

    x_ref   : (TILE_T, TILE_B, D)  input slab for this chunk
    wih_ref : (D, 4H)  input weights,     gate order [i, f, o, g]
    whh_ref : (H, 4H)  recurrent weights, gate order [i, f, o, g]
    b_ref   : (1, 4H)  b_ih + b_hh (f32)
    h_ref   : (TILE_B, H)  output block; doubles as resident recurrent state
    c_ref   : (TILE_B, H)  output block; doubles as resident recurrent state
    """
    tc = pl.program_id(1)          # time-chunk index (innermost, "arbitrary")

    @pl.when(tc == 0)
    def _():                       # zero-init state for this batch block
        h_ref[...] = jnp.zeros_like(h_ref)
        c_ref[...] = jnp.zeros_like(c_ref)

    H = h_ref.shape[-1]
    tile_t, tile_b, D = x_ref.shape

    wih = wih_ref[...]             # hoist weight / bias loads out of the loop
    whh = whh_ref[...]
    b = b_ref[...]

    # Fused input projection for all TILE_T steps: one matmul with
    # M = TILE_T*TILE_B instead of TILE_T tiny M = TILE_B matmuls.  The
    # (TILE_T, TILE_B) -> (TILE_T*TILE_B) merge is layout-free (TILE_B is a
    # multiple of 8 sublanes, D stays on lanes).
    x2d = x_ref[...].reshape(tile_t * tile_b, D)
    xp_all = jnp.dot(x2d, wih, preferred_element_type=jnp.float32) + b

    h = h_ref[...]
    c = c_ref[...]
    for t in range(tile_t):        # static, fully unrolled recurrence
        # Static, sublane-aligned slice of the fused projection.
        xp_t = xp_all[t * tile_b:(t + 1) * tile_b, :]
        gates = xp_t + jnp.dot(h.astype(whh.dtype), whh,
                               preferred_element_type=jnp.float32)
        # Gate order is [i, f, o, g]: the three sigmoid gates are contiguous.
        # sigmoid(z) = 0.5 * (tanh(z/2) + 1) -> one EUP push, no divide.
        sig = 0.5 * (jnp.tanh(0.5 * gates[:, :3 * H]) + 1.0)
        i_g = sig[:, 0 * H:1 * H]
        f_g = sig[:, 1 * H:2 * H]
        o_g = sig[:, 2 * H:3 * H]
        g_g = jnp.tanh(gates[:, 3 * H:])
        c = f_g * c + i_g * g_g
        h = o_g * jnp.tanh(c)

    h_ref[...] = h
    c_ref[...] = c


def lstm_model_forward(x, params, *, compute_dtype=jnp.float32):
    """x: (B, T, D) float32. Returns (output (B,1), h_n (B,H), c_n (B,H))."""
    B, T, D = x.shape
    H = params["whh"].shape[0]
    G4 = 4 * H

    # ---- one-time layout prep (XLA, outside the kernel) -------------------
    # Reorder gate columns from PyTorch's [i, f, g, o] to [i, f, o, g].
    def reorder(w):
        return jnp.concatenate(
            [w[..., :2 * H], w[..., 3 * H:4 * H], w[..., 2 * H:3 * H]],
            axis=-1)

    wih = reorder(params["wih"]).astype(compute_dtype)                 # (D,4H)
    whh = reorder(params["whh"]).astype(compute_dtype)                 # (H,4H)
    b = reorder(params["b_ih"] + params["b_hh"]).reshape(1, G4)        # (1,4H)
    b = b.astype(jnp.float32)

    # ---- batch padding to full sublane tiles; batch = parallel grid axis --
    tile_b = min(128, _round_up(B, 8))
    B_pad = _round_up(B, tile_b)
    # Largest divisor of T that is <= 16 timesteps per in-kernel unroll.
    tile_t = next(tt for tt in range(min(T, 16), 0, -1) if T % tt == 0)

    x_tbd = jnp.transpose(x, (1, 0, 2)).astype(compute_dtype)          # (T,B,D)
    if B_pad != B:
        x_tbd = jnp.pad(x_tbd, ((0, 0), (0, B_pad - B), (0, 0)))

    grid = (B_pad // tile_b, T // tile_t)

    h_n, c_n = pl.pallas_call(
        _lstm_kernel,
        out_shape=(
            jax.ShapeDtypeStruct((B_pad, H), jnp.float32),
            jax.ShapeDtypeStruct((B_pad, H), jnp.float32),
        ),
        grid_spec=pltpu.PrefetchScalarGridSpec(
            num_scalar_prefetch=0,
            grid=grid,
            in_specs=[
                # x: per (batch block, time chunk) slab.
                pl.BlockSpec((tile_t, tile_b, D), lambda bi, ti: (ti, bi, 0)),
                # Grid-invariant weights / bias (constant block index ->
                # fetched once, VMEM-resident).
                pl.BlockSpec((D, G4), lambda bi, ti: (0, 0)),
                pl.BlockSpec((H, G4), lambda bi, ti: (0, 0)),
                pl.BlockSpec((1, G4), lambda bi, ti: (0, 0)),
            ],
            out_specs=[
                # Constant block index along the (last) time axis -> output
                # block stays VMEM-resident and serves as the recurrent state.
                pl.BlockSpec((tile_b, H), lambda bi, ti: (bi, 0)),
                pl.BlockSpec((tile_b, H), lambda bi, ti: (bi, 0)),
            ],
        ),
        compiler_params=pltpu.CompilerParams(
            dimension_semantics=("parallel", "arbitrary")),
    )(x_tbd, wih, whh, b)

    h_n = h_n[:B]
    c_n = c_n[:B]
    # Final Linear(hidden -> 1): lane-width-1 projection is cheaper as a tiny
    # XLA matmul on h_n than as a masked-store Pallas output.
    out = h_n @ params["w_out"] + params["b_out"]
    return out, h_n, c_n


def make_params(key, input_dim, hidden_dim):
    """Deterministic synthetic parameters (uniform, PyTorch-like scale)."""
    k = jax.random.split(key, 6)
    s = 1.0 / jnp.sqrt(hidden_dim)
    # Stored transposed vs PyTorch: wih (D, 4H), whh (H, 4H), w_out (H, 1),
    # PyTorch gate order [i, f, g, o].
    return {
        "wih": jax.random.uniform(k[0], (input_dim, 4 * hidden_dim),
                                  jnp.float32, -s, s),
        "whh": jax.random.uniform(k[1], (hidden_dim, 4 * hidden_dim),
                                  jnp.float32, -s, s),
        "b_ih": jax.random.uniform(k[2], (4 * hidden_dim,), jnp.float32, -s, s),
        "b_hh": jax.random.uniform(k[3], (4 * hidden_dim,), jnp.float32, -s, s),
        "w_out": jax.random.uniform(k[4], (hidden_dim, 1), jnp.float32, -s, s),
        "b_out": jax.random.uniform(k[5], (1,), jnp.float32, -s, s),
    }


def _reference_forward(x, params):
    """Pure-JAX reference (lax.scan LSTM), PyTorch gate order [i,f,g,o]."""
    B, T, D = x.shape
    H = params["whh"].shape[0]
    b = params["b_ih"] + params["b_hh"]

    def step(carry, x_t):
        h, c = carry
        gates = x_t @ params["wih"] + h @ params["whh"] + b
        i = jax.nn.sigmoid(gates[:, :H])
        f = jax.nn.sigmoid(gates[:, H:2 * H])
        g = jnp.tanh(gates[:, 2 * H:3 * H])
        o = jax.nn.sigmoid(gates[:, 3 * H:4 * H])
        c = f * c + i * g
        h = o * jnp.tanh(c)
        return (h, c), None

    h0 = jnp.zeros((B, H), jnp.float32)
    c0 = jnp.zeros((B, H), jnp.float32)
    (h_n, c_n), _ = jax.lax.scan(step, (h0, c0), jnp.transpose(x, (1, 0, 2)))
    out = h_n @ params["w_out"] + params["b_out"]
    return out, h_n, c_n


if __name__ == "__main__":
    B, T, D, H = 2, 8, 4, 32
    key = jax.random.PRNGKey(0)
    kx, kp = jax.random.split(key)
    x = jax.random.normal(kx, (B, T, D), jnp.float32)
    params = make_params(kp, D, H)

    out, h_n, c_n = lstm_model_forward(x, params)
    jax.block_until_ready((out, h_n, c_n))

    ref_out, ref_h, ref_c = _reference_forward(x, params)
    assert jnp.allclose(out, ref_out, atol=1e-4, rtol=1e-4)
    assert jnp.allclose(h_n, ref_h, atol=1e-4, rtol=1e-4)
    assert jnp.allclose(c_n, ref_c, atol=1e-4, rtol=1e-4)

    print("KERNEL_OK")
</pallas_src>

<mosaic_0001>
module attributes {stable_mosaic.version = 11 : i64} {
  func.func @_lstm_kernel(%arg0: i32, %arg1: i32, %arg2: memref<8x8x4xf32, #tpu.memory_space<vmem>>, %arg3: memref<4x128xf32, #tpu.memory_space<vmem>>, %arg4: memref<32x128xf32, #tpu.memory_space<vmem>>, %arg5: memref<1x128xf32, #tpu.memory_space<vmem>>, %arg6: memref<8x32xf32, #tpu.memory_space<vmem>>, %arg7: memref<8x32xf32, #tpu.memory_space<vmem>>) attributes {dimension_semantics = [#tpu.dimension_semantics<parallel>, #tpu.dimension_semantics<arbitrary>], iteration_bounds = array<i64: 1, 1>, scalar_prefetch = 0 : i64, scratch_operands = 0 : i64, tpu.core_type = #tpu.core_type<tc>, window_params = [{transform_indices = @transform_0, window_bounds = array<i64: 8, 8, 4>}, {pipeline_mode = #tpu.pipeline_mode<synchronous>, transform_indices = @transform_1, window_bounds = array<i64: 4, 128>}, {pipeline_mode = #tpu.pipeline_mode<synchronous>, transform_indices = @transform_2, window_bounds = array<i64: 32, 128>}, {pipeline_mode = #tpu.pipeline_mode<synchronous>, transform_indices = @transform_3, window_bounds = array<i64: 1, 128>}, {transform_indices = @transform_4, window_bounds = array<i64: 8, 32>}, {transform_indices = @transform_5, window_bounds = array<i64: 8, 32>}]} {
    %c0_i32 = arith.constant 0 : i32
    %0 = arith.cmpi eq, %arg1, %c0_i32 : i32
    %1 = arith.extui %0 : i1 to i32
    %c0_i32_0 = arith.constant 0 : i32
    %2 = arith.cmpi ne, %1, %c0_i32_0 : i32
    scf.if %2 {
      %cst_49 = arith.constant 0.000000e+00 : f32
      %183 = vector.broadcast %cst_49 : f32 to vector<8x32xf32>
      %c0_50 = arith.constant 0 : index
      %c0_51 = arith.constant 0 : index
      %184 = vector.load %arg6[%c0_50, %c0_51] : memref<8x32xf32, #tpu.memory_space<vmem>>, vector<8x32xf32>
      tpu.vector_store %arg6[%c0_50, %c0_51], %183 {strides = array<i32>} : memref<8x32xf32, #tpu.memory_space<vmem>>, vector<8x32xf32>,
      %cst_52 = arith.constant 0.000000e+00 : f32
      %185 = vector.broadcast %cst_52 : f32 to vector<8x32xf32>
      %c0_53 = arith.constant 0 : index
      %c0_54 = arith.constant 0 : index
      %186 = vector.load %arg7[%c0_53, %c0_54] : memref<8x32xf32, #tpu.memory_space<vmem>>, vector<8x32xf32>
      tpu.vector_store %arg7[%c0_53, %c0_54], %185 {strides = array<i32>} : memref<8x32xf32, #tpu.memory_space<vmem>>, vector<8x32xf32>,
    } else {
    }
    %c0 = arith.constant 0 : index
    %c0_1 = arith.constant 0 : index
    %3 = vector.load %arg3[%c0, %c0_1] : memref<4x128xf32, #tpu.memory_space<vmem>>, vector<4x128xf32>
    %c0_2 = arith.constant 0 : index
    %c0_3 = arith.constant 0 : index
    %4 = vector.load %arg4[%c0_2, %c0_3] : memref<32x128xf32, #tpu.memory_space<vmem>>, vector<32x128xf32>
    %c0_4 = arith.constant 0 : index
    %c0_5 = arith.constant 0 : index
    %5 = vector.load %arg5[%c0_4, %c0_5] : memref<1x128xf32, #tpu.memory_space<vmem>>, vector<1x128xf32>
    %c0_6 = arith.constant 0 : index
    %c0_7 = arith.constant 0 : index
    %c0_8 = arith.constant 0 : index
    %6 = vector.load %arg2[%c0_6, %c0_7, %c0_8] : memref<8x8x4xf32, #tpu.memory_space<vmem>>, vector<8x8x4xf32>
    %7 = vector.shape_cast %6 : vector<8x8x4xf32> to vector<64x4xf32>
    %cst = arith.constant dense<0.000000e+00> : vector<64x128xf32>
    %8 = tpu.matmul %7, %3, %cst {dimension_numbers = #tpu.dot_dimension_numbers<[1], [0], [0], [1], [0, 0, 1, 1], [], []>} : vector<64x4xf32>, vector<4x128xf32>, vector<64x128xf32> -> vector<64x128xf32>
    %9 = vector.broadcast %5 : vector<1x128xf32> to vector<64x128xf32>
    %10 = arith.addf %8, %9 : vector<64x128xf32>
    %c0_9 = arith.constant 0 : index
    %c0_10 = arith.constant 0 : index
    %11 = vector.load %arg6[%c0_9, %c0_10] : memref<8x32xf32, #tpu.memory_space<vmem>>, vector<8x32xf32>
    %c0_11 = arith.constant 0 : index
    %c0_12 = arith.constant 0 : index
    %12 = vector.load %arg7[%c0_11, %c0_12] : memref<8x32xf32, #tpu.memory_space<vmem>>, vector<8x32xf32>
    %13 = vector.extract_strided_slice %10 {offsets = [0, 0], sizes = [8, 128], strides = [1, 1]} : vector<64x128xf32> to vector<8x128xf32>
    %cst_13 = arith.constant dense<0.000000e+00> : vector<8x128xf32>
    %14 = tpu.matmul %11, %4, %cst_13 {dimension_numbers = #tpu.dot_dimension_numbers<[1], [0], [0], [1], [0, 0, 1, 1], [], []>} : vector<8x32xf32>, vector<32x128xf32>, vector<8x128xf32> -> vector<8x128xf32>
    %15 = arith.addf %13, %14 : vector<8x128xf32>
    %16 = vector.extract_strided_slice %15 {offsets = [0, 0], sizes = [8, 96], strides = [1, 1]} : vector<8x128xf32> to vector<8x96xf32>
    %cst_14 = arith.constant 5.000000e-01 : f32
    %17 = vector.broadcast %cst_14 : f32 to vector<8x96xf32>
    %18 = arith.mulf %17, %16 : vector<8x96xf32>
    %19 = math.tanh %18 : vector<8x96xf32>
    %cst_15 = arith.constant 1.000000e+00 : f32
    %20 = vector.broadcast %cst_15 : f32 to vector<8x96xf32>
    %21 = arith.addf %19, %20 : vector<8x96xf32>
    %cst_16 = arith.constant 5.000000e-01 : f32
    %22 = vector.broadcast %cst_16 : f32 to vector<8x96xf32>
    %23 = arith.mulf %22, %21 : vector<8x96xf32>
    %24 = vector.extract_strided_slice %23 {offsets = [0, 0], sizes = [8, 32], strides = [1, 1]} : vector<8x96xf32> to vector<8x32xf32>
    %25 = vector.extract_strided_slice %23 {offsets = [0, 32], sizes = [8, 32], strides = [1, 1]} : vector<8x96xf32> to vector<8x32xf32>
    %26 = vector.extract_strided_slice %23 {offsets = [0, 64], sizes = [8, 32], strides = [1, 1]} : vector<8x96xf32> to vector<8x32xf32>
    %27 = vector.extract_strided_slice %15 {offsets = [0, 96], sizes = [8, 32], strides = [1, 1]} : vector<8x128xf32> to vector<8x32xf32>
    %28 = math.tanh %27 : vector<8x32xf32>
    %29 = arith.mulf %25, %12 : vector<8x32xf32>
    %30 = arith.mulf %24, %28 : vector<8x32xf32>
    %31 = arith.addf %29, %30 : vector<8x32xf32>
    %32 = math.tanh %31 : vector<8x32xf32>
    %33 = arith.mulf %26, %32 : vector<8x32xf32>
    %34 = vector.extract_strided_slice %10 {offsets = [8, 0], sizes = [8, 128], strides = [1, 1]} : vector<64x128xf32> to vector<8x128xf32>
    %cst_17 = arith.constant dense<0.000000e+00> : vector<8x128xf32>
    %35 = tpu.matmul %33, %4, %cst_17 {dimension_numbers = #tpu.dot_dimension_numbers<[1], [0], [0], [1], [0, 0, 1, 1], [], []>} : vector<8x32xf32>, vector<32x128xf32>, vector<8x128xf32> -> vector<8x128xf32>
    %36 = arith.addf %34, %35 : vector<8x128xf32>
    %37 = vector.extract_strided_slice %36 {offsets = [0, 0], sizes = [8, 96], strides = [1, 1]} : vector<8x128xf32> to vector<8x96xf32>
    %cst_18 = arith.constant 5.000000e-01 : f32
    %38 = vector.broadcast %cst_18 : f32 to vector<8x96xf32>
    %39 = arith.mulf %38, %37 : vector<8x96xf32>
    %40 = math.tanh %39 : vector<8x96xf32>
    %cst_19 = arith.constant 1.000000e+00 : f32
    %41 = vector.broadcast %cst_19 : f32 to vector<8x96xf32>
    %42 = arith.addf %40, %41 : vector<8x96xf32>
    %cst_20 = arith.constant 5.000000e-01 : f32
    %43 = vector.broadcast %cst_20 : f32 to vector<8x96xf32>
    %44 = arith.mulf %43, %42 : vector<8x96xf32>
    %45 = vector.extract_strided_slice %44 {offsets = [0, 0], sizes = [8, 32], strides = [1, 1]} : vector<8x96xf32> to vector<8x32xf32>
    %46 = vector.extract_strided_slice %44 {offsets = [0, 32], sizes = [8, 32], strides = [1, 1]} : vector<8x96xf32> to vector<8x32xf32>
    %47 = vector.extract_strided_slice %44 {offsets = [0, 64], sizes = [8, 32], strides = [1, 1]} : vector<8x96xf32> to vector<8x32xf32>
    %48 = vector.extract_strided_slice %36 {offsets = [0, 96], sizes = [8, 32], strides = [1, 1]} : vector<8x128xf32> to vector<8x32xf32>
    %49 = math.tanh %48 : vector<8x32xf32>
    %50 = arith.mulf %46, %31 : vector<8x32xf32>
    %51 = arith.mulf %45, %49 : vector<8x32xf32>
    %52 = arith.addf %50, %51 : vector<8x32xf32>
    %53 = math.tanh %52 : vector<8x32xf32>
    %54 = arith.mulf %47, %53 : vector<8x32xf32>
    %55 = vector.extract_strided_slice %10 {offsets = [16, 0], sizes = [8, 128], strides = [1, 1]} : vector<64x128xf32> to vector<8x128xf32>
    %cst_21 = arith.constant dense<0.000000e+00> : vector<8x128xf32>
    %56 = tpu.matmul %54, %4, %cst_21 {dimension_numbers = #tpu.dot_dimension_numbers<[1], [0], [0], [1], [0, 0, 1, 1], [], []>} : vector<8x32xf32>, vector<32x128xf32>, vector<8x128xf32> -> vector<8x128xf32>
    %57 = arith.addf %55, %56 : vector<8x128xf32>
    %58 = vector.extract_strided_slice %57 {offsets = [0, 0], sizes = [8, 96], strides = [1, 1]} : vector<8x128xf32> to vector<8x96xf32>
    %cst_22 = arith.constant 5.000000e-01 : f32
    %59 = vector.broadcast %cst_22 : f32 to vector<8x96xf32>
    %60 = arith.mulf %59, %58 : vector<8x96xf32>
    %61 = math.tanh %60 : vector<8x96xf32>
    %cst_23 = arith.constant 1.000000e+00 : f32
    %62 = vector.broadcast %cst_23 : f32 to vector<8x96xf32>
    %63 = arith.addf %61, %62 : vector<8x96xf32>
    %cst_24 = arith.constant 5.000000e-01 : f32
    %64 = vector.broadcast %cst_24 : f32 to vector<8x96xf32>
    %65 = arith.mulf %64, %63 : vector<8x96xf32>
    %66 = vector.extract_strided_slice %65 {offsets = [0, 0], sizes = [8, 32], strides = [1, 1]} : vector<8x96xf32> to vector<8x32xf32>
    %67 = vector.extract_strided_slice %65 {offsets = [0, 32], sizes = [8, 32], strides = [1, 1]} : vector<8x96xf32> to vector<8x32xf32>
    %68 = vector.extract_strided_slice %65 {offsets = [0, 64], sizes = [8, 32], strides = [1, 1]} : vector<8x96xf32> to vector<8x32xf32>
    %69 = vector.extract_strided_slice %57 {offsets = [0, 96], sizes = [8, 32], strides = [1, 1]} : vector<8x128xf32> to vector<8x32xf32>
    %70 = math.tanh %69 : vector<8x32xf32>
    %71 = arith.mulf %67, %52 : vector<8x32xf32>
    %72 = arith.mulf %66, %70 : vector<8x32xf32>
    %73 = arith.addf %71, %72 : vector<8x32xf32>
    %74 = math.tanh %73 : vector<8x32xf32>
    %75 = arith.mulf %68, %74 : vector<8x32xf32>
    %76 = vector.extract_strided_slice %10 {offsets = [24, 0], sizes = [8, 128], strides = [1, 1]} : vector<64x128xf32> to vector<8x128xf32>
    %cst_25 = arith.constant dense<0.000000e+00> : vector<8x128xf32>
    %77 = tpu.matmul %75, %4, %cst_25 {dimension_numbers = #tpu.dot_dimension_numbers<[1], [0], [0], [1], [0, 0, 1, 1], [], []>} : vector<8x32xf32>, vector<32x128xf32>, vector<8x128xf32> -> vector<8x128xf32>
    %78 = arith.addf %76, %77 : vector<8x128xf32>
    %79 = vector.extract_strided_slice %78 {offsets = [0, 0], sizes = [8, 96], strides = [1, 1]} : vector<8x128xf32> to vector<8x96xf32>
    %cst_26 = arith.constant 5.000000e-01 : f32
    %80 = vector.broadcast %cst_26 : f32 to vector<8x96xf32>
    %81 = arith.mulf %80, %79 : vector<8x96xf32>
    %82 = math.tanh %81 : vector<8x96xf32>
    %cst_27 = arith.constant 1.000000e+00 : f32
    %83 = vector.broadcast %cst_27 : f32 to vector<8x96xf32>
    %84 = arith.addf %82, %83 : vector<8x96xf32>
    %cst_28 = arith.constant 5.000000e-01 : f32
    %85 = vector.broadcast %cst_28 : f32 to vector<8x96xf32>
    %86 = arith.mulf %85, %84 : vector<8x96xf32>
    %87 = vector.extract_strided_slice %86 {offsets = [0, 0], sizes = [8, 32], strides = [1, 1]} : vector<8x96xf32> to vector<8x32xf32>
    %88 = vector.extract_strided_slice %86 {offsets = [0, 32], sizes = [8, 32], strides = [1, 1]} : vector<8x96xf32> to vector<8x32xf32>
    %89 = vector.extract_strided_slice %86 {offsets = [0, 64], sizes = [8, 32], strides = [1, 1]} : vector<8x96xf32> to vector<8x32xf32>
    %90 = vector.extract_strided_slice %78 {offsets = [0, 96], sizes = [8, 32], strides = [1, 1]} : vector<8x128xf32> to vector<8x32xf32>
    %91 = math.tanh %90 : vector<8x32xf32>
    %92 = arith.mulf %88, %73 : vector<8x32xf32>
    %93 = arith.mulf %87, %91 : vector<8x32xf32>
    %94 = arith.addf %92, %93 : vector<8x32xf32>
    %95 = math.tanh %94 : vector<8x32xf32>
    %96 = arith.mulf %89, %95 : vector<8x32xf32>
    %97 = vector.extract_strided_slice %10 {offsets = [32, 0], sizes = [8, 128], strides = [1, 1]} : vector<64x128xf32> to vector<8x128xf32>
    %cst_29 = arith.constant dense<0.000000e+00> : vector<8x128xf32>
    %98 = tpu.matmul %96, %4, %cst_29 {dimension_numbers = #tpu.dot_dimension_numbers<[1], [0], [0], [1], [0, 0, 1, 1], [], []>} : vector<8x32xf32>, vector<32x128xf32>, vector<8x128xf32> -> vector<8x128xf32>
    %99 = arith.addf %97, %98 : vector<8x128xf32>
    %100 = vector.extract_strided_slice %99 {offsets = [0, 0], sizes = [8, 96], strides = [1, 1]} : vector<8x128xf32> to vector<8x96xf32>
    %cst_30 = arith.constant 5.000000e-01 : f32
    %101 = vector.broadcast %cst_30 : f32 to vector<8x96xf32>
    %102 = arith.mulf %101, %100 : vector<8x96xf32>
    %103 = math.tanh %102 : vector<8x96xf32>
    %cst_31 = arith.constant 1.000000e+00 : f32
    %104 = vector.broadcast %cst_31 : f32 to vector<8x96xf32>
    %105 = arith.addf %103, %104 : vector<8x96xf32>
    %cst_32 = arith.constant 5.000000e-01 : f32
    %106 = vector.broadcast %cst_32 : f32 to vector<8x96xf32>
    %107 = arith.mulf %106, %105 : vector<8x96xf32>
    %108 = vector.extract_strided_slice %107 {offsets = [0, 0], sizes = [8, 32], strides = [1, 1]} : vector<8x96xf32> to vector<8x32xf32>
    %109 = vector.extract_strided_slice %107 {offsets = [0, 32], sizes = [8, 32], strides = [1, 1]} : vector<8x96xf32> to vector<8x32xf32>
    %110 = vector.extract_strided_slice %107 {offsets = [0, 64], sizes = [8, 32], strides = [1, 1]} : vector<8x96xf32> to vector<8x32xf32>
    %111 = vector.extract_strided_slice %99 {offsets = [0, 96], sizes = [8, 32], strides = [1, 1]} : vector<8x128xf32> to vector<8x32xf32>
    %112 = math.tanh %111 : vector<8x32xf32>
    %113 = arith.mulf %109, %94 : vector<8x32xf32>
    %114 = arith.mulf %108, %112 : vector<8x32xf32>
    %115 = arith.addf %113, %114 : vector<8x32xf32>
    %116 = math.tanh %115 : vector<8x32xf32>
    %117 = arith.mulf %110, %116 : vector<8x32xf32>
    %118 = vector.extract_strided_slice %10 {offsets = [40, 0], sizes = [8, 128], strides = [1, 1]} : vector<64x128xf32> to vector<8x128xf32>
    %cst_33 = arith.constant dense<0.000000e+00> : vector<8x128xf32>
    %119 = tpu.matmul %117, %4, %cst_33 {dimension_numbers = #tpu.dot_dimension_numbers<[1], [0], [0], [1], [0, 0, 1, 1], [], []>} : vector<8x32xf32>, vector<32x128xf32>, vector<8x128xf32> -> vector<8x128xf32>
    %120 = arith.addf %118, %119 : vector<8x128xf32>
    %121 = vector.extract_strided_slice %120 {offsets = [0, 0], sizes = [8, 96], strides = [1, 1]} : vector<8x128xf32> to vector<8x96xf32>
    %cst_34 = arith.constant 5.000000e-01 : f32
    %122 = vector.broadcast %cst_34 : f32 to vector<8x96xf32>
    %123 = arith.mulf %122, %121 : vector<8x96xf32>
    %124 = math.tanh %123 : vector<8x96xf32>
    %cst_35 = arith.constant 1.000000e+00 : f32
    %125 = vector.broadcast %cst_35 : f32 to vector<8x96xf32>
    %126 = arith.addf %124, %125 : vector<8x96xf32>
    %cst_36 = arith.constant 5.000000e-01 : f32
    %127 = vector.broadcast %cst_36 : f32 to vector<8x96xf32>
    %128 = arith.mulf %127, %126 : vector<8x96xf32>
    %129 = vector.extract_strided_slice %128 {offsets = [0, 0], sizes = [8, 32], strides = [1, 1]} : vector<8x96xf32> to vector<8x32xf32>
    %130 = vector.extract_strided_slice %128 {offsets = [0, 32], sizes = [8, 32], strides = [1, 1]} : vector<8x96xf32> to vector<8x32xf32>
    %131 = vector.extract_strided_slice %128 {offsets = [0, 64], sizes = [8, 32], strides = [1, 1]} : vector<8x96xf32> to vector<8x32xf32>
    %132 = vector.extract_strided_slice %120 {offsets = [0, 96], sizes = [8, 32], strides = [1, 1]} : vector<8x128xf32> to vector<8x32xf32>
    %133 = math.tanh %132 : vector<8x32xf32>
    %134 = arith.mulf %130, %115 : vector<8x32xf32>
    %135 = arith.mulf %129, %133 : vector<8x32xf32>
    %136 = arith.addf %134, %135 : vector<8x32xf32>
    %137 = math.tanh %136 : vector<8x32xf32>
    %138 = arith.mulf %131, %137 : vector<8x32xf32>
    %139 = vector.extract_strided_slice %10 {offsets = [48, 0], sizes = [8, 128], strides = [1, 1]} : vector<64x128xf32> to vector<8x128xf32>
    %cst_37 = arith.constant dense<0.000000e+00> : vector<8x128xf32>
    %140 = tpu.matmul %138, %4, %cst_37 {dimension_numbers = #tpu.dot_dimension_numbers<[1], [0], [0], [1], [0, 0, 1, 1], [], []>} : vector<8x32xf32>, vector<32x128xf32>, vector<8x128xf32> -> vector<8x128xf32>
    %141 = arith.addf %139, %140 : vector<8x128xf32>
    %142 = vector.extract_strided_slice %141 {offsets = [0, 0], sizes = [8, 96], strides = [1, 1]} : vector<8x128xf32> to vector<8x96xf32>
    %cst_38 = arith.constant 5.000000e-01 : f32
    %143 = vector.broadcast %cst_38 : f32 to vector<8x96xf32>
    %144 = arith.mulf %143, %142 : vector<8x96xf32>
    %145 = math.tanh %144 : vector<8x96xf32>
    %cst_39 = arith.constant 1.000000e+00 : f32
    %146 = vector.broadcast %cst_39 : f32 to vector<8x96xf32>
    %147 = arith.addf %145, %146 : vector<8x96xf32>
    %cst_40 = arith.constant 5.000000e-01 : f32
    %148 = vector.broadcast %cst_40 : f32 to vector<8x96xf32>
    %149 = arith.mulf %148, %147 : vector<8x96xf32>
    %150 = vector.extract_strided_slice %149 {offsets = [0, 0], sizes = [8, 32], strides = [1, 1]} : vector<8x96xf32> to vector<8x32xf32>
    %151 = vector.extract_strided_slice %149 {offsets = [0, 32], sizes = [8, 32], strides = [1, 1]} : vector<8x96xf32> to vector<8x32xf32>
    %152 = vector.extract_strided_slice %149 {offsets = [0, 64], sizes = [8, 32], strides = [1, 1]} : vector<8x96xf32> to vector<8x32xf32>
    %153 = vector.extract_strided_slice %141 {offsets = [0, 96], sizes = [8, 32], strides = [1, 1]} : vector<8x128xf32> to vector<8x32xf32>
    %154 = math.tanh %153 : vector<8x32xf32>
    %155 = arith.mulf %151, %136 : vector<8x32xf32>
    %156 = arith.mulf %150, %154 : vector<8x32xf32>
    %157 = arith.addf %155, %156 : vector<8x32xf32>
    %158 = math.tanh %157 : vector<8x32xf32>
    %159 = arith.mulf %152, %158 : vector<8x32xf32>
    %160 = vector.extract_strided_slice %10 {offsets = [56, 0], sizes = [8, 128], strides = [1, 1]} : vector<64x128xf32> to vector<8x128xf32>
    %cst_41 = arith.constant dense<0.000000e+00> : vector<8x128xf32>
    %161 = tpu.matmul %159, %4, %cst_41 {dimension_numbers = #tpu.dot_dimension_numbers<[1], [0], [0], [1], [0, 0, 1, 1], [], []>} : vector<8x32xf32>, vector<32x128xf32>, vector<8x128xf32> -> vector<8x128xf32>
    %162 = arith.addf %160, %161 : vector<8x128xf32>
    %163 = vector.extract_strided_slice %162 {offsets = [0, 0], sizes = [8, 96], strides = [1, 1]} : vector<8x128xf32> to vector<8x96xf32>
    %cst_42 = arith.constant 5.000000e-01 : f32
    %164 = vector.broadcast %cst_42 : f32 to vector<8x96xf32>
    %165 = arith.mulf %164, %163 : vector<8x96xf32>
    %166 = math.tanh %165 : vector<8x96xf32>
    %cst_43 = arith.constant 1.000000e+00 : f32
    %167 = vector.broadcast %cst_43 : f32 to vector<8x96xf32>
    %168 = arith.addf %166, %167 : vector<8x96xf32>
    %cst_44 = arith.constant 5.000000e-01 : f32
    %169 = vector.broadcast %cst_44 : f32 to vector<8x96xf32>
    %170 = arith.mulf %169, %168 : vector<8x96xf32>
    %171 = vector.extract_strided_slice %170 {offsets = [0, 0], sizes = [8, 32], strides = [1, 1]} : vector<8x96xf32> to vector<8x32xf32>
    %172 = vector.extract_strided_slice %170 {offsets = [0, 32], sizes = [8, 32], strides = [1, 1]} : vector<8x96xf32> to vector<8x32xf32>
    %173 = vector.extract_strided_slice %170 {offsets = [0, 64], sizes = [8, 32], strides = [1, 1]} : vector<8x96xf32> to vector<8x32xf32>
    %174 = vector.extract_strided_slice %162 {offsets = [0, 96], sizes = [8, 32], strides = [1, 1]} : vector<8x128xf32> to vector<8x32xf32>
    %175 = math.tanh %174 : vector<8x32xf32>
    %176 = arith.mulf %172, %157 : vector<8x32xf32>
    %177 = arith.mulf %171, %175 : vector<8x32xf32>
    %178 = arith.addf %176, %177 : vector<8x32xf32>
    %179 = math.tanh %178 : vector<8x32xf32>
    %180 = arith.mulf %173, %179 : vector<8x32xf32>
    %c0_45 = arith.constant 0 : index
    %c0_46 = arith.constant 0 : index
    %181 = vector.load %arg6[%c0_45, %c0_46] : memref<8x32xf32, #tpu.memory_space<vmem>>, vector<8x32xf32>
    tpu.vector_store %arg6[%c0_45, %c0_46], %180 {strides = array<i32>} : memref<8x32xf32, #tpu.memory_space<vmem>>, vector<8x32xf32>,
    %c0_47 = arith.constant 0 : index
    %c0_48 = arith.constant 0 : index
    %182 = vector.load %arg7[%c0_47, %c0_48] : memref<8x32xf32, #tpu.memory_space<vmem>>, vector<8x32xf32>
    tpu.vector_store %arg7[%c0_47, %c0_48], %178 {strides = array<i32>} : memref<8x32xf32, #tpu.memory_space<vmem>>, vector<8x32xf32>,
    return
  }
  func.func @transform_0(%arg0: i32, %arg1: i32) -> (i32, i32, i32) {
    %c0_i32 = arith.constant 0 : i32
    %c0_i32_0 = arith.constant 0 : i32
    return %arg1, %arg0, %c0_i32 : i32, i32, i32
  }
  func.func @transform_1(%arg0: i32, %arg1: i32) -> (i32, i32) {
    %c0_i32 = arith.constant 0 : i32
    %c0_i32_0 = arith.constant 0 : i32
    %c0_i32_1 = arith.constant 0 : i32
    return %c0_i32, %c0_i32_0 : i32, i32
  }
  func.func @transform_2(%arg0: i32, %arg1: i32) -> (i32, i32) {
    %c0_i32 = arith.constant 0 : i32
    %c0_i32_0 = arith.constant 0 : i32
    %c0_i32_1 = arith.constant 0 : i32
    return %c0_i32, %c0_i32_0 : i32, i32
  }
  func.func @transform_3(%arg0: i32, %arg1: i32) -> (i32, i32) {
    %c0_i32 = arith.constant 0 : i32
    %c0_i32_0 = arith.constant 0 : i32
    %c0_i32_1 = arith.constant 0 : i32
    return %c0_i32, %c0_i32_0 : i32, i32
  }
  func.func @transform_4(%arg0: i32, %arg1: i32) -> (i32, i32) {
    %c0_i32 = arith.constant 0 : i32
    %c0_i32_0 = arith.constant 0 : i32
    return %arg0, %c0_i32 : i32, i32
  }
  func.func @transform_5(%arg0: i32, %arg1: i32) -> (i32, i32) {
    %c0_i32 = arith.constant 0 : i32
    %c0_i32_0 = arith.constant 0 : i32
    return %arg0, %c0_i32 : i32, i32
  }
}

</mosaic_0001>

<llo_original>
// kernel: tpu_custom_call.1
$region0: #{tpu_custom_call.1}
  #allocation0 [shape = 'u32[]', space=smem, size = 0x4, offset = 0x4, fixed_abs, tag = 'smem constant byte address 0x4 - core index']
  #allocation1 [shape = 'u32[144,128]{1,0:T(1,128)}', space=vmem, size = 0x12000, scoped, tag = 'internal scratch']
  %s0 = inlined_call_operand.vmem [shape: f32[8,8,4], index: 0, kind: input, shape index: {}]
  %s1 = inlined_call_operand.vmem [shape: f32[4,128], index: 1, kind: input, shape index: {}]
  %s2 = inlined_call_operand.vmem [shape: f32[32,128], index: 2, kind: input, shape index: {}]
  %s3 = inlined_call_operand.vmem [shape: f32[1,128], index: 3, kind: input, shape index: {}]
  %s4 = inlined_call_operand.hbm [shape: f32[8,32], index: 4, kind: output, shape index: {0}]
  %s5 = inlined_call_operand.hbm [shape: f32[8,32], index: 5, kind: output, shape index: {1}]
  %6 = xla_tuple %s4, %s5
  %s7 = sld [smem:[#allocation0]]
  $region38: #{tpu_custom_call.1} parent=0
    _
  %s9 = ssub.s32 1, %s7
  %s10 = scalar_select 0, %s9, %s7
  $region1: #{tpu_custom_call.1} parent=0
    #allocation2 [shape = 'u8[4096]{0}', space=vmem, size = 0x1000, scoped, tag = 'output window, operand 0, single buffered']
    #allocation3 [shape = 's32[1]{0}', space=sflag, size = 0x4, scoped, tag = 'scoped memory for tpu_custom_call.1']
    #allocation4 [shape = 'u8[4096]{0}', space=vmem, size = 0x1000, scoped, tag = 'output window, operand 1, single buffered']
    #allocation5 [shape = 's32[1]{0}', space=sflag, size = 0x4, scoped, tag = 'scoped memory for tpu_custom_call.1']
    %11 = vsyncpa [#allocation3], 0
    %12 = vsyncpa [#allocation5], 0
    // Predicated region
    $region2: #{tpu_custom_call.1} parent=1 // pred_check
      _
    $region3: #{tpu_custom_call.1} parent=1 // pred_check_branch
      %14 = sbr.rel (0) target = $region5
    $region4: #{tpu_custom_call.1} parent=1 // pred_region
      _
    $region5: #{tpu_custom_call.1} parent=1 // pred_fallthru
      _
    // Predicated region
    $region6: #{tpu_custom_call.1} parent=1 // pred_check
      _
    $region7: #{tpu_custom_call.1} parent=1 // pred_check_branch
      %16 = sbr.rel (0) target = $region9
    $region8: #{tpu_custom_call.1} parent=1 // pred_region
      _
    $region9: #{tpu_custom_call.1} parent=1 // pred_fallthru
      _
    // Predicated region
    $region10: #{tpu_custom_call.1} parent=1 // pred_check
      _
    $region11: #{tpu_custom_call.1} parent=1 // pred_check_branch
      %18 = sbr.rel (0) target = $region13
    $region12: #{tpu_custom_call.1} parent=1 // pred_region
      _
    $region13: #{tpu_custom_call.1} parent=1 // pred_fallthru
      _
    // Predicated region
    $region14: #{tpu_custom_call.1} parent=1 // pred_check
      _
    $region15: #{tpu_custom_call.1} parent=1 // pred_check_branch
      %20 = sbr.rel (0) target = $region17
    $region16: #{tpu_custom_call.1} parent=1 // pred_region
      _
    $region17: #{tpu_custom_call.1} parent=1 // pred_fallthru
      _
    %p21 = scmp.eq.s32.totalorder 0, 0
    // Predicated region
    $region18: #{tpu_custom_call.1} parent=1 // pred_check
      %p22 = pneg %p21
    $region19: #{tpu_custom_call.1} parent=1 // pred_check_branch
      %24 = sbr.rel (%p22) target = $region21
    $region20: #{tpu_custom_call.1} parent=1 // pred_region
      %vm25 = vcmask 261120
      %26 = vst.msk [vmem:[#allocation2] sm:$0xff] %vm25, 0.0
      %27 = vst.msk [vmem:[#allocation4] sm:$0xff] %vm25, 0.0
    $region21: #{tpu_custom_call.1} parent=1 // pred_fallthru
      _
    %v28 = vld [vmem:[%s1] sm:$0xf]
    %v29 = vld [vmem:[%s2] sm:$0xff]
    %v30 = vld [vmem:[%s2 + $0x8] sm:$0xff]
    %v31 = vld [vmem:[%s2 + $0x10] sm:$0xff]
    %v32 = vld [vmem:[%s2 + $0x18] sm:$0xff]
    %v33 = vld [vmem:[%s3] sm:$0x1]
    %v34 = vld [vmem:[%s0] sm:$0xff]
    %v35 = vld [vmem:[%s0 + $0x8] sm:$0xff]
    %v36 = vld [vmem:[%s0 + $0x10] sm:$0xff]
    %v37 = vld [vmem:[%s0 + $0x18] sm:$0xff]
    %v38 = vld [vmem:[%s0 + $0x20] sm:$0xff]
    %v39 = vld [vmem:[%s0 + $0x28] sm:$0xff]
    %v40 = vld [vmem:[%s0 + $0x30] sm:$0xff]
    %v41 = vld [vmem:[%s0 + $0x38] sm:$0xff]
    %v43 = vlaneseq
    %v44 = vshrl.u32 %v43, 7
    %v45 = vsub.s32 0, %v44
    %v46 = vrot.slane %v33, %v45
    %vm48 = vcmask 31744
    %v50 = vsel %vm48, %v34, 0
    %v53 = vsel %vm48, %v35, 0
    %v56 = vsel %vm48, %v36, 0
    %v59 = vsel %vm48, %v37, 0
    %v62 = vsel %vm48, %v38, 0
    %v65 = vsel %vm48, %v39, 0
    %v68 = vsel %vm48, %v40, 0
    %v71 = vsel %vm48, %v41, 0
    %vm73 = vcmask 1043456
    %v75 = vsel %vm73, %v28, 0
    %77 = vmatprep.subr.mxu0 0.0
    %78 = vmatpush1.msra.mxu0 0.0
    %79 = vmatprep.subr.mxu0 0.0
    %80 = vmatpush1.msra.mxu0 0.0
    %81 = vmatprep.subr.mxu0 0.0
    %82 = vmatpush1.msra.mxu0 0.0
    %83 = vmatprep.subr.mxu0 0.0
    %84 = vmatpush1.msra.mxu0 0.0
    %85 = vmatprep.subr.mxu0 0.0
    %86 = vmatpush1.msra.mxu0 0.0
    %87 = vmatprep.subr.mxu0 0.0
    %88 = vmatpush1.msra.mxu0 0.0
    %89 = vmatprep.subr.mxu0 0.0
    %90 = vmatpush1.msra.mxu0 0.0
    %91 = vmatprep.subr.mxu0 0.0
    %92 = vmatpush1.msra.mxu0 0.0
    %93 = vmatprep.subr.mxu0 0.0
    %94 = vmatpush1.msra.mxu0 0.0
    %95 = vmatprep.subr.mxu0 0.0
    %96 = vmatpush1.msra.mxu0 0.0
    %97 = vmatprep.subr.mxu0 0.0
    %98 = vmatpush1.msra.mxu0 0.0
    %99 = vmatprep.subr.mxu0 0.0
    %100 = vmatpush1.msra.mxu0 0.0
    %101 = vmatprep.subr.mxu0 0.0
    %102 = vmatpush1.msra.mxu0 0.0
    %103 = vmatprep.subr.mxu0 0.0
    %104 = vmatpush1.msra.mxu0 0.0
    %105 = vmatprep.subr.mxu0 0.0
    %106 = vmatpush1.msra.mxu0 0.0
    %107 = vmatprep.subr.mxu0 0.0
    %108 = vmatpush1.msra.mxu0 %v75
    %109 = vmatprep.subr.mxu0 0.0
    %110 = vmatpush2.msra.mxu0 0.0
    %111 = vmatprep.subr.mxu0 0.0
    %112 = vmatpush2.msra.mxu0 0.0
    %113 = vmatprep.subr.mxu0 0.0
    %114 = vmatpush2.msra.mxu0 0.0
    %115 = vmatprep.subr.mxu0 0.0
    %116 = vmatpush2.msra.mxu0 0.0
    %117 = vmatprep.subr.mxu0 0.0
    %118 = vmatpush2.msra.mxu0 0.0
    %119 = vmatprep.subr.mxu0 0.0
    %120 = vmatpush2.msra.mxu0 0.0
    %121 = vmatprep.subr.mxu0 0.0
    %122 = vmatpush2.msra.mxu0 0.0
    %123 = vmatprep.subr.mxu0 0.0
    %124 = vmatpush2.msra.mxu0 0.0
    %125 = vmatprep.subr.mxu0 0.0
    %126 = vmatpush2.msra.mxu0 0.0
    %127 = vmatprep.subr.mxu0 0.0
    %128 = vmatpush2.msra.mxu0 0.0
    %129 = vmatprep.subr.mxu0 0.0
    %130 = vmatpush2.msra.mxu0 0.0
    %131 = vmatprep.subr.mxu0 0.0
    %132 = vmatpush2.msra.mxu0 0.0
    %133 = vmatprep.subr.mxu0 0.0
    %134 = vmatpush2.msra.mxu0 0.0
    %135 = vmatprep.subr.mxu0 0.0
    %136 = vmatpush2.msra.mxu0 0.0
    %137 = vmatprep.subr.mxu0 0.0
    %138 = vmatpush2.msra.mxu0 0.0
    %139 = vmatprep.subr.mxu0 0.0
    %140 = vmatpush2.msra.mxu0 0.0
    %141 = vmatprep.mubr.f32.mxu0 0.0
    %142 = vmatmul.mubr.f32.gmra.mxu0 %v50
    %v143 = vpop.f32.mrf.mxu0
    %v144 = vadd.f32 %v46, %v143
    %v145 = vpop.f32.mrf.mxu0
    %146 = vmatprep.mubr.f32.mxu0 0.0
    %147 = vmatmul.mubr.f32.gmra.mxu0 %v53
    %v148 = vpop.f32.mrf.mxu0
    %v149 = vadd.f32 %v46, %v148
    %v150 = vpop.f32.mrf.mxu0
    %151 = vmatprep.mubr.f32.mxu0 0.0
    %152 = vmatmul.mubr.f32.gmra.mxu0 %v56
    %v153 = vpop.f32.mrf.mxu0
    %v154 = vadd.f32 %v46, %v153
    %v155 = vpop.f32.mrf.mxu0
    %156 = vmatprep.mubr.f32.mxu0 0.0
    %157 = vmatmul.mubr.f32.gmra.mxu0 %v59
    %v158 = vpop.f32.mrf.mxu0
    %v159 = vadd.f32 %v46, %v158
    %v160 = vpop.f32.mrf.mxu0
    %161 = vmatprep.mubr.f32.mxu0 0.0
    %162 = vmatmul.mubr.f32.gmra.mxu0 %v62
    %v163 = vpop.f32.mrf.mxu0
    %v164 = vadd.f32 %v46, %v163
    %v165 = vpop.f32.mrf.mxu0
    %166 = vmatprep.mubr.f32.mxu0 0.0
    %167 = vmatmul.mubr.f32.gmra.mxu0 %v65
    %v168 = vpop.f32.mrf.mxu0
    %v169 = vadd.f32 %v46, %v168
    %v170 = vpop.f32.mrf.mxu0
    %171 = vmatprep.mubr.f32.mxu0 0.0
    %172 = vmatmul.mubr.f32.gmra.mxu0 %v68
    %v173 = vpop.f32.mrf.mxu0
    %v174 = vadd.f32 %v46, %v173
    %v175 = vpop.f32.mrf.mxu0
    %176 = vmatprep.mubr.f32.mxu0 0.0
    %177 = vmatmul.mubr.f32.gmra.mxu0 %v71
    %v178 = vpop.f32.mrf.mxu0
    %v179 = vadd.f32 %v46, %v178
    %v180 = vpop.f32.mrf.mxu0
    %181 = vdwg.mxu0
    %v182 = vld [vmem:[#allocation2] sm:$0xff]
    %v183 = vld [vmem:[#allocation4] sm:$0xff]
    %vm184 = vcmask 261120
    %v186 = vsel %vm184, %v182, 0
    %188 = vmatprep.subr.mxu0 0.0
    %189 = vmatpush1.msra.mxu0 0.0
    %190 = vmatprep.subr.mxu0 0.0
    %191 = vmatpush1.msra.mxu0 0.0
    %192 = vmatprep.subr.mxu0 0.0
    %193 = vmatpush1.msra.mxu0 0.0
    %194 = vmatprep.subr.mxu0 0.0
    %195 = vmatpush1.msra.mxu0 0.0
    %196 = vmatprep.subr.mxu0 0.0
    %197 = vmatpush1.msra.mxu0 0.0
    %198 = vmatprep.subr.mxu0 0.0
    %199 = vmatpush1.msra.mxu0 0.0
    %200 = vmatprep.subr.mxu0 0.0
    %201 = vmatpush1.msra.mxu0 0.0
    %202 = vmatprep.subr.mxu0 0.0
    %203 = vmatpush1.msra.mxu0 0.0
    %204 = vmatprep.subr.mxu0 0.0
    %205 = vmatpush1.msra.mxu0 0.0
    %206 = vmatprep.subr.mxu0 0.0
    %207 = vmatpush1.msra.mxu0 0.0
    %208 = vmatprep.subr.mxu0 0.0
    %209 = vmatpush1.msra.mxu0 0.0
    %210 = vmatprep.subr.mxu0 0.0
    %211 = vmatpush1.msra.mxu0 0.0
    %212 = vmatprep.subr.mxu0 0.0
    %213 = vmatpush1.msra.mxu0 %v32
    %214 = vmatprep.subr.mxu0 0.0
    %215 = vmatpush1.msra.mxu0 %v31
    %216 = vmatprep.subr.mxu0 0.0
    %217 = vmatpush1.msra.mxu0 %v30
    %218 = vmatprep.subr.mxu0 0.0
    %219 = vmatpush1.msra.mxu0 %v29
    %220 = vmatprep.subr.mxu0 0.0
    %221 = vmatpush2.msra.mxu0 0.0
    %222 = vmatprep.subr.mxu0 0.0
    %223 = vmatpush2.msra.mxu0 0.0
    %224 = vmatprep.subr.mxu0 0.0
    %225 = vmatpush2.msra.mxu0 0.0
    %226 = vmatprep.subr.mxu0 0.0
    %227 = vmatpush2.msra.mxu0 0.0
    %228 = vmatprep.subr.mxu0 0.0
    %229 = vmatpush2.msra.mxu0 0.0
    %230 = vmatprep.subr.mxu0 0.0
    %231 = vmatpush2.msra.mxu0 0.0
    %232 = vmatprep.subr.mxu0 0.0
    %233 = vmatpush2.msra.mxu0 0.0
    %234 = vmatprep.subr.mxu0 0.0
    %235 = vmatpush2.msra.mxu0 0.0
    %236 = vmatprep.subr.mxu0 0.0
    %237 = vmatpush2.msra.mxu0 0.0
    %238 = vmatprep.subr.mxu0 0.0
    %239 = vmatpush2.msra.mxu0 0.0
    %240 = vmatprep.subr.mxu0 0.0
    %241 = vmatpush2.msra.mxu0 0.0
    %242 = vmatprep.subr.mxu0 0.0
    %243 = vmatpush2.msra.mxu0 0.0
    %244 = vmatprep.subr.mxu0 0.0
    %245 = vmatpush2.msra.mxu0 0.0
    %246 = vmatprep.subr.mxu0 0.0
    %247 = vmatpush2.msra.mxu0 0.0
    %248 = vmatprep.subr.mxu0 0.0
    %249 = vmatpush2.msra.mxu0 0.0
    %250 = vmatprep.subr.mxu0 0.0
    %251 = vmatpush2.msra.mxu0 0.0
    %252 = vmatprep.mubr.f32.mxu0 0.0
    %253 = vmatmul.mubr.f32.gmra.mxu0 %v186
    %v254 = vpop.f32.mrf.mxu0
    %v255 = vadd.f32 0.0, %v254
    %v256 = vpop.f32.mrf.mxu0
    %257 = vdwg.mxu0
    %v258 = vadd.f32 %v144, %v255
    %v259 = vmul.f32 %v258, 0.5
    %v260 = vtanh.pop %v259
    %v261 = vadd.f32 %v260, 1.0
    %v262 = vmul.f32 %v261, 0.5
    %v263 = vtanh.pop %v258
    %265 = vrot.lane.b32.xlu0 %v183, 32
    %v266 = vpop.permute.xlu0 %265
    %v268 = vmul.f32 %v262, %v266
    %270 = vrot.lane.b32.xlu0 %v263, 32
    %v271 = vpop.permute.xlu0 %270
    %v273 = vmul.f32 %v262, %v271
    %275 = vrot.lane.b32.xlu0 %v273, 32
    %v276 = vpop.permute.xlu0 %275
    %v278 = vadd.f32 %v268, %v276
    %v279 = vtanh.pop %v278
    %281 = vrot.lane.b32.xlu0 %v279, 32
    %v282 = vpop.permute.xlu0 %281
    %v284 = vmul.f32 %v262, %v282
    %286 = vrot.lane.b32.xlu0 %v284, 64
    %v287 = vpop.permute.xlu0 %286
    %v288 = vsel %vm184, %v287, 0
    %290 = vmatprep.subr.mxu0 0.0
    %291 = vmatpush1.msra.mxu0 0.0
    %292 = vmatprep.subr.mxu0 0.0
    %293 = vmatpush1.msra.mxu0 0.0
    %294 = vmatprep.subr.mxu0 0.0
    %295 = vmatpush1.msra.mxu0 0.0
    %296 = vmatprep.subr.mxu0 0.0
    %297 = vmatpush1.msra.mxu0 0.0
    %298 = vmatprep.subr.mxu0 0.0
    %299 = vmatpush1.msra.mxu0 0.0
    %300 = vmatprep.subr.mxu0 0.0
    %301 = vmatpush1.msra.mxu0 0.0
    %302 = vmatprep.subr.mxu0 0.0
    %303 = vmatpush1.msra.mxu0 0.0
    %304 = vmatprep.subr.mxu0 0.0
    %305 = vmatpush1.msra.mxu0 0.0
    %306 = vmatprep.subr.mxu0 0.0
    %307 = vmatpush1.msra.mxu0 0.0
    %308 = vmatprep.subr.mxu0 0.0
    %309 = vmatpush1.msra.mxu0 0.0
    %310 = vmatprep.subr.mxu0 0.0
    %311 = vmatpush1.msra.mxu0 0.0
    %312 = vmatprep.subr.mxu0 0.0
    %313 = vmatpush1.msra.mxu0 0.0
    %314 = vmatprep.subr.mxu0 0.0
    %315 = vmatpush1.msra.mxu0 %v32
    %316 = vmatprep.subr.mxu0 0.0
    %317 = vmatpush1.msra.mxu0 %v31
    %318 = vmatprep.subr.mxu0 0.0
    %319 = vmatpush1.msra.mxu0 %v30
    %320 = vmatprep.subr.mxu0 0.0
    %321 = vmatpush1.msra.mxu0 %v29
    %322 = vmatprep.subr.mxu0 0.0
    %323 = vmatpush2.msra.mxu0 0.0
    %324 = vmatprep.subr.mxu0 0.0
    %325 = vmatpush2.msra.mxu0 0.0
    %326 = vmatprep.subr.mxu0 0.0
    %327 = vmatpush2.msra.mxu0 0.0
    %328 = vmatprep.subr.mxu0 0.0
    %329 = vmatpush2.msra.mxu0 0.0
    %330 = vmatprep.subr.mxu0 0.0
    %331 = vmatpush2.msra.mxu0 0.0
    %332 = vmatprep.subr.mxu0 0.0
    %333 = vmatpush2.msra.mxu0 0.0
    %334 = vmatprep.subr.mxu0 0.0
    %335 = vmatpush2.msra.mxu0 0.0
    %336 = vmatprep.subr.mxu0 0.0
    %337 = vmatpush2.msra.mxu0 0.0
    %338 = vmatprep.subr.mxu0 0.0
    %339 = vmatpush2.msra.mxu0 0.0
    %340 = vmatprep.subr.mxu0 0.0
    %341 = vmatpush2.msra.mxu0 0.0
    %342 = vmatprep.subr.mxu0 0.0
    %343 = vmatpush2.msra.mxu0 0.0
    %344 = vmatprep.subr.mxu0 0.0
    %345 = vmatpush2.msra.mxu0 0.0
    %346 = vmatprep.subr.mxu0 0.0
    %347 = vmatpush2.msra.mxu0 0.0
    %348 = vmatprep.subr.mxu0 0.0
    %349 = vmatpush2.msra.mxu0 0.0
    %350 = vmatprep.subr.mxu0 0.0
    %351 = vmatpush2.msra.mxu0 0.0
    %352 = vmatprep.subr.mxu0 0.0
    %353 = vmatpush2.msra.mxu0 0.0
    %354 = vmatprep.mubr.f32.mxu0 0.0
    %355 = vmatmul.mubr.f32.gmra.mxu0 %v288
    %v356 = vpop.f32.mrf.mxu0
    %v357 = vadd.f32 0.0, %v356
    %v358 = vpop.f32.mrf.mxu0
    %359 = vdwg.mxu0
    %v360 = vadd.f32 %v149, %v357
    %v361 = vmul.f32 %v360, 0.5
    %v362 = vtanh.pop %v361
    %v363 = vadd.f32 %v362, 1.0
    %v364 = vmul.f32 %v363, 0.5
    %v365 = vtanh.pop %v360
    %v366 = vmul.f32 %v364, %v278
    %368 = vrot.lane.b32.xlu0 %v365, 32
    %v369 = vpop.permute.xlu0 %368
    %v371 = vmul.f32 %v364, %v369
    %373 = vrot.lane.b32.xlu0 %v371, 32
    %v374 = vpop.permute.xlu0 %373
    %v376 = vadd.f32 %v366, %v374
    %v377 = vtanh.pop %v376
    %379 = vrot.lane.b32.xlu0 %v377, 32
    %v380 = vpop.permute.xlu0 %379
    %v382 = vmul.f32 %v364, %v380
    %384 = vrot.lane.b32.xlu0 %v382, 64
    %v385 = vpop.permute.xlu0 %384
    %v386 = vsel %vm184, %v385, 0
    %388 = vmatprep.subr.mxu0 0.0
    %389 = vmatpush1.msra.mxu0 0.0
    %390 = vmatprep.subr.mxu0 0.0
    %391 = vmatpush1.msra.mxu0 0.0
    %392 = vmatprep.subr.mxu0 0.0
    %393 = vmatpush1.msra.mxu0 0.0
    %394 = vmatprep.subr.mxu0 0.0
    %395 = vmatpush1.msra.mxu0 0.0
    %396 = vmatprep.subr.mxu0 0.0
    %397 = vmatpush1.msra.mxu0 0.0
    %398 = vmatprep.subr.mxu0 0.0
    %399 = vmatpush1.msra.mxu0 0.0
    %400 = vmatprep.subr.mxu0 0.0
    %401 = vmatpush1.msra.mxu0 0.0
    %402 = vmatprep.subr.mxu0 0.0
    %403 = vmatpush1.msra.mxu0 0.0
    %404 = vmatprep.subr.mxu0 0.0
    %405 = vmatpush1.msra.mxu0 0.0
    %406 = vmatprep.subr.mxu0 0.0
    %407 = vmatpush1.msra.mxu0 0.0
    %408 = vmatprep.subr.mxu0 0.0
    %409 = vmatpush1.msra.mxu0 0.0
    %410 = vmatprep.subr.mxu0 0.0
    %411 = vmatpush1.msra.mxu0 0.0
    %412 = vmatprep.subr.mxu0 0.0
    %413 = vmatpush1.msra.mxu0 %v32
    %414 = vmatprep.subr.mxu0 0.0
    %415 = vmatpush1.msra.mxu0 %v31
    %416 = vmatprep.subr.mxu0 0.0
    %417 = vmatpush1.msra.mxu0 %v30
    %418 = vmatprep.subr.mxu0 0.0
    %419 = vmatpush1.msra.mxu0 %v29
    %420 = vmatprep.subr.mxu0 0.0
    %421 = vmatpush2.msra.mxu0 0.0
    %422 = vmatprep.subr.mxu0 0.0
    %423 = vmatpush2.msra.mxu0 0.0
    %424 = vmatprep.subr.mxu0 0.0
    %425 = vmatpush2.msra.mxu0 0.0
    %426 = vmatprep.subr.mxu0 0.0
    %427 = vmatpush2.msra.mxu0 0.0
    %428 = vmatprep.subr.mxu0 0.0
    %429 = vmatpush2.msra.mxu0 0.0
    %430 = vmatprep.subr.mxu0 0.0
    %431 = vmatpush2.msra.mxu0 0.0
    %432 = vmatprep.subr.mxu0 0.0
    %433 = vmatpush2.msra.mxu0 0.0
    %434 = vmatprep.subr.mxu0 0.0
    %435 = vmatpush2.msra.mxu0 0.0
    %436 = vmatprep.subr.mxu0 0.0
    %437 = vmatpush2.msra.mxu0 0.0
    %438 = vmatprep.subr.mxu0 0.0
    %439 = vmatpush2.msra.mxu0 0.0
    %440 = vmatprep.subr.mxu0 0.0
    %441 = vmatpush2.msra.mxu0 0.0
    %442 = vmatprep.subr.mxu0 0.0
    %443 = vmatpush2.msra.mxu0 0.0
    %444 = vmatprep.subr.mxu0 0.0
    %445 = vmatpush2.msra.mxu0 0.0
    %446 = vmatprep.subr.mxu0 0.0
    %447 = vmatpush2.msra.mxu0 0.0
    %448 = vmatprep.subr.mxu0 0.0
    %449 = vmatpush2.msra.mxu0 0.0
    %450 = vmatprep.subr.mxu0 0.0
    %451 = vmatpush2.msra.mxu0 0.0
    %452 = vmatprep.mubr.f32.mxu0 0.0
    %453 = vmatmul.mubr.f32.gmra.mxu0 %v386
    %v454 = vpop.f32.mrf.mxu0
    %v455 = vadd.f32 0.0, %v454
    %v456 = vpop.f32.mrf.mxu0
    %457 = vdwg.mxu0
    %v458 = vadd.f32 %v154, %v455
    %v459 = vmul.f32 %v458, 0.5
    %v460 = vtanh.pop %v459
    %v461 = vadd.f32 %v460, 1.0
    %v462 = vmul.f32 %v461, 0.5
    %v463 = vtanh.pop %v458
    %v464 = vmul.f32 %v462, %v376
    %466 = vrot.lane.b32.xlu0 %v463, 32
    %v467 = vpop.permute.xlu0 %466
    %v469 = vmul.f32 %v462, %v467
    %471 = vrot.lane.b32.xlu0 %v469, 32
    %v472 = vpop.permute.xlu0 %471
    %v474 = vadd.f32 %v464, %v472
    %v475 = vtanh.pop %v474
    %477 = vrot.lane.b32.xlu0 %v475, 32
    %v478 = vpop.permute.xlu0 %477
    %v480 = vmul.f32 %v462, %v478
    %482 = vrot.lane.b32.xlu0 %v480, 64
    %v483 = vpop.permute.xlu0 %482
    %v484 = vsel %vm184, %v483, 0
    %486 = vmatprep.subr.mxu0 0.0
    %487 = vmatpush1.msra.mxu0 0.0
    %488 = vmatprep.subr.mxu0 0.0
    %489 = vmatpush1.msra.mxu0 0.0
    %490 = vmatprep.subr.mxu0 0.0
    %491 = vmatpush1.msra.mxu0 0.0
    %492 = vmatprep.subr.mxu0 0.0
    %493 = vmatpush1.msra.mxu0 0.0
    %494 = vmatprep.subr.mxu0 0.0
    %495 = vmatpush1.msra.mxu0 0.0
    %496 = vmatprep.subr.mxu0 0.0
    %497 = vmatpush1.msra.mxu0 0.0
    %498 = vmatprep.subr.mxu0 0.0
    %499 = vmatpush1.msra.mxu0 0.0
    %500 = vmatprep.subr.mxu0 0.0
    %501 = vmatpush1.msra.mxu0 0.0
    %502 = vmatprep.subr.mxu0 0.0
    %503 = vmatpush1.msra.mxu0 0.0
    %504 = vmatprep.subr.mxu0 0.0
    %505 = vmatpush1.msra.mxu0 0.0
    %506 = vmatprep.subr.mxu0 0.0
    %507 = vmatpush1.msra.mxu0 0.0
    %508 = vmatprep.subr.mxu0 0.0
    %509 = vmatpush1.msra.mxu0 0.0
    %510 = vmatprep.subr.mxu0 0.0
    %511 = vmatpush1.msra.mxu0 %v32
    %512 = vmatprep.subr.mxu0 0.0
    %513 = vmatpush1.msra.mxu0 %v31
    %514 = vmatprep.subr.mxu0 0.0
    %515 = vmatpush1.msra.mxu0 %v30
    %516 = vmatprep.subr.mxu0 0.0
    %517 = vmatpush1.msra.mxu0 %v29
    %518 = vmatprep.subr.mxu0 0.0
    %519 = vmatpush2.msra.mxu0 0.0
    %520 = vmatprep.subr.mxu0 0.0
    %521 = vmatpush2.msra.mxu0 0.0
    %522 = vmatprep.subr.mxu0 0.0
    %523 = vmatpush2.msra.mxu0 0.0
    %524 = vmatprep.subr.mxu0 0.0
    %525 = vmatpush2.msra.mxu0 0.0
    %526 = vmatprep.subr.mxu0 0.0
    %527 = vmatpush2.msra.mxu0 0.0
    %528 = vmatprep.subr.mxu0 0.0
    %529 = vmatpush2.msra.mxu0 0.0
    %530 = vmatprep.subr.mxu0 0.0
    %531 = vmatpush2.msra.mxu0 0.0
    %532 = vmatprep.subr.mxu0 0.0
    %533 = vmatpush2.msra.mxu0 0.0
    %534 = vmatprep.subr.mxu0 0.0
    %535 = vmatpush2.msra.mxu0 0.0
    %536 = vmatprep.subr.mxu0 0.0
    %537 = vmatpush2.msra.mxu0 0.0
    %538 = vmatprep.subr.mxu0 0.0
    %539 = vmatpush2.msra.mxu0 0.0
    %540 = vmatprep.subr.mxu0 0.0
    %541 = vmatpush2.msra.mxu0 0.0
    %542 = vmatprep.subr.mxu0 0.0
    %543 = vmatpush2.msra.mxu0 0.0
    %544 = vmatprep.subr.mxu0 0.0
    %545 = vmatpush2.msra.mxu0 0.0
    %546 = vmatprep.subr.mxu0 0.0
    %547 = vmatpush2.msra.mxu0 0.0
    %548 = vmatprep.subr.mxu0 0.0
    %549 = vmatpush2.msra.mxu0 0.0
    %550 = vmatprep.mubr.f32.mxu0 0.0
    %551 = vmatmul.mubr.f32.gmra.mxu0 %v484
    %v552 = vpop.f32.mrf.mxu0
    %v553 = vadd.f32 0.0, %v552
    %v554 = vpop.f32.mrf.mxu0
    %555 = vdwg.mxu0
    %v556 = vadd.f32 %v159, %v553
    %v557 = vmul.f32 %v556, 0.5
    %v558 = vtanh.pop %v557
    %v559 = vadd.f32 %v558, 1.0
    %v560 = vmul.f32 %v559, 0.5
    %v561 = vtanh.pop %v556
    %v562 = vmul.f32 %v560, %v474
    %564 = vrot.lane.b32.xlu0 %v561, 32
    %v565 = vpop.permute.xlu0 %564
    %v567 = vmul.f32 %v560, %v565
    %569 = vrot.lane.b32.xlu0 %v567, 32
    %v570 = vpop.permute.xlu0 %569
    %v572 = vadd.f32 %v562, %v570
    %v573 = vtanh.pop %v572
    %575 = vrot.lane.b32.xlu0 %v573, 32
    %v576 = vpop.permute.xlu0 %575
    %v578 = vmul.f32 %v560, %v576
    %580 = vrot.lane.b32.xlu0 %v578, 64
    %v581 = vpop.permute.xlu0 %580
    %v582 = vsel %vm184, %v581, 0
    %584 = vmatprep.subr.mxu0 0.0
    %585 = vmatpush1.msra.mxu0 0.0
    %586 = vmatprep.subr.mxu0 0.0
    %587 = vmatpush1.msra.mxu0 0.0
    %588 = vmatprep.subr.mxu0 0.0
    %589 = vmatpush1.msra.mxu0 0.0
    %590 = vmatprep.subr.mxu0 0.0
    %591 = vmatpush1.msra.mxu0 0.0
    %592 = vmatprep.subr.mxu0 0.0
    %593 = vmatpush1.msra.mxu0 0.0
    %594 = vmatprep.subr.mxu0 0.0
    %595 = vmatpush1.msra.mxu0 0.0
    %596 = vmatprep.subr.mxu0 0.0
    %597 = vmatpush1.msra.mxu0 0.0
    %598 = vmatprep.subr.mxu0 0.0
    %599 = vmatpush1.msra.mxu0 0.0
    %600 = vmatprep.subr.mxu0 0.0
    %601 = vmatpush1.msra.mxu0 0.0
    %602 = vmatprep.subr.mxu0 0.0
    %603 = vmatpush1.msra.mxu0 0.0
    %604 = vmatprep.subr.mxu0 0.0
    %605 = vmatpush1.msra.mxu0 0.0
    %606 = vmatprep.subr.mxu0 0.0
    %607 = vmatpush1.msra.mxu0 0.0
    %608 = vmatprep.subr.mxu0 0.0
    %609 = vmatpush1.msra.mxu0 %v32
    %610 = vmatprep.subr.mxu0 0.0
    %611 = vmatpush1.msra.mxu0 %v31
    %612 = vmatprep.subr.mxu0 0.0
    %613 = vmatpush1.msra.mxu0 %v30
    %614 = vmatprep.subr.mxu0 0.0
    %615 = vmatpush1.msra.mxu0 %v29
    %616 = vmatprep.subr.mxu0 0.0
    %617 = vmatpush2.msra.mxu0 0.0
    %618 = vmatprep.subr.mxu0 0.0
    %619 = vmatpush2.msra.mxu0 0.0
    %620 = vmatprep.subr.mxu0 0.0
    %621 = vmatpush2.msra.mxu0 0.0
    %622 = vmatprep.subr.mxu0 0.0
    %623 = vmatpush2.msra.mxu0 0.0
    %624 = vmatprep.subr.mxu0 0.0
    %625 = vmatpush2.msra.mxu0 0.0
    %626 = vmatprep.subr.mxu0 0.0
    %627 = vmatpush2.msra.mxu0 0.0
    %628 = vmatprep.subr.mxu0 0.0
    %629 = vmatpush2.msra.mxu0 0.0
    %630 = vmatprep.subr.mxu0 0.0
    %631 = vmatpush2.msra.mxu0 0.0
    %632 = vmatprep.subr.mxu0 0.0
    %633 = vmatpush2.msra.mxu0 0.0
    %634 = vmatprep.subr.mxu0 0.0
    %635 = vmatpush2.msra.mxu0 0.0
    %636 = vmatprep.subr.mxu0 0.0
    %637 = vmatpush2.msra.mxu0 0.0
    %638 = vmatprep.subr.mxu0 0.0
    %639 = vmatpush2.msra.mxu0 0.0
    %640 = vmatprep.subr.mxu0 0.0
    %641 = vmatpush2.msra.mxu0 0.0
    %642 = vmatprep.subr.mxu0 0.0
    %643 = vmatpush2.msra.mxu0 0.0
    %644 = vmatprep.subr.mxu0 0.0
    %645 = vmatpush2.msra.mxu0 0.0
    %646 = vmatprep.subr.mxu0 0.0
    %647 = vmatpush2.msra.mxu0 0.0
    %648 = vmatprep.mubr.f32.mxu0 0.0
    %649 = vmatmul.mubr.f32.gmra.mxu0 %v582
    %v650 = vpop.f32.mrf.mxu0
    %v651 = vadd.f32 0.0, %v650
    %v652 = vpop.f32.mrf.mxu0
    %653 = vdwg.mxu0
    %v654 = vadd.f32 %v164, %v651
    %v655 = vmul.f32 %v654, 0.5
    %v656 = vtanh.pop %v655
    %v657 = vadd.f32 %v656, 1.0
    %v658 = vmul.f32 %v657, 0.5
    %v659 = vtanh.pop %v654
    %v660 = vmul.f32 %v658, %v572
    %662 = vrot.lane.b32.xlu0 %v659, 32
    %v663 = vpop.permute.xlu0 %662
    %v665 = vmul.f32 %v658, %v663
    %667 = vrot.lane.b32.xlu0 %v665, 32
    %v668 = vpop.permute.xlu0 %667
    %v670 = vadd.f32 %v660, %v668
    %v671 = vtanh.pop %v670
    %673 = vrot.lane.b32.xlu0 %v671, 32
    %v674 = vpop.permute.xlu0 %673
    %v676 = vmul.f32 %v658, %v674
    %678 = vrot.lane.b32.xlu0 %v676, 64
    %v679 = vpop.permute.xlu0 %678
    %v680 = vsel %vm184, %v679, 0
    %682 = vmatprep.subr.mxu0 0.0
    %683 = vmatpush1.msra.mxu0 0.0
    %684 = vmatprep.subr.mxu0 0.0
    %685 = vmatpush1.msra.mxu0 0.0
    %686 = vmatprep.subr.mxu0 0.0
    %687 = vmatpush1.msra.mxu0 0.0
    %688 = vmatprep.subr.mxu0 0.0
    %689 = vmatpush1.msra.mxu0 0.0
    %690 = vmatprep.subr.mxu0 0.0
    %691 = vmatpush1.msra.mxu0 0.0
    %692 = vmatprep.subr.mxu0 0.0
    %693 = vmatpush1.msra.mxu0 0.0
    %694 = vmatprep.subr.mxu0 0.0
    %695 = vmatpush1.msra.mxu0 0.0
    %696 = vmatprep.subr.mxu0 0.0
    %697 = vmatpush1.msra.mxu0 0.0
    %698 = vmatprep.subr.mxu0 0.0
    %699 = vmatpush1.msra.mxu0 0.0
    %700 = vmatprep.subr.mxu0 0.0
    %701 = vmatpush1.msra.mxu0 0.0
    %702 = vmatprep.subr.mxu0 0.0
    %703 = vmatpush1.msra.mxu0 0.0
    %704 = vmatprep.subr.mxu0 0.0
    %705 = vmatpush1.msra.mxu0 0.0
    %706 = vmatprep.subr.mxu0 0.0
    %707 = vmatpush1.msra.mxu0 %v32
    %708 = vmatprep.subr.mxu0 0.0
    %709 = vmatpush1.msra.mxu0 %v31
    %710 = vmatprep.subr.mxu0 0.0
    %711 = vmatpush1.msra.mxu0 %v30
    %712 = vmatprep.subr.mxu0 0.0
    %713 = vmatpush1.msra.mxu0 %v29
    %714 = vmatprep.subr.mxu0 0.0
    %715 = vmatpush2.msra.mxu0 0.0
    %716 = vmatprep.subr.mxu0 0.0
    %717 = vmatpush2.msra.mxu0 0.0
    %718 = vmatprep.subr.mxu0 0.0
    %719 = vmatpush2.msra.mxu0 0.0
    %720 = vmatprep.subr.mxu0 0.0
    %721 = vmatpush2.msra.mxu0 0.0
    %722 = vmatprep.subr.mxu0 0.0
    %723 = vmatpush2.msra.mxu0 0.0
    %724 = vmatprep.subr.mxu0 0.0
    %725 = vmatpush2.msra.mxu0 0.0
    %726 = vmatprep.subr.mxu0 0.0
    %727 = vmatpush2.msra.mxu0 0.0
    %728 = vmatprep.subr.mxu0 0.0
    %729 = vmatpush2.msra.mxu0 0.0
    %730 = vmatprep.subr.mxu0 0.0
    %731 = vmatpush2.msra.mxu0 0.0
    %732 = vmatprep.subr.mxu0 0.0
    %733 = vmatpush2.msra.mxu0 0.0
    %734 = vmatprep.subr.mxu0 0.0
    %735 = vmatpush2.msra.mxu0 0.0
    %736 = vmatprep.subr.mxu0 0.0
    %737 = vmatpush2.msra.mxu0 0.0
    %738 = vmatprep.subr.mxu0 0.0
    %739 = vmatpush2.msra.mxu0 0.0
    %740 = vmatprep.subr.mxu0 0.0
    %741 = vmatpush2.msra.mxu0 0.0
    %742 = vmatprep.subr.mxu0 0.0
    %743 = vmatpush2.msra.mxu0 0.0
    %744 = vmatprep.subr.mxu0 0.0
    %745 = vmatpush2.msra.mxu0 0.0
    %746 = vmatprep.mubr.f32.mxu0 0.0
    %747 = vmatmul.mubr.f32.gmra.mxu0 %v680
    %v748 = vpop.f32.mrf.mxu0
    %v749 = vadd.f32 0.0, %v748
    %v750 = vpop.f32.mrf.mxu0
    %751 = vdwg.mxu0
    %v752 = vadd.f32 %v169, %v749
    %v753 = vmul.f32 %v752, 0.5
    %v754 = vtanh.pop %v753
    %v755 = vadd.f32 %v754, 1.0
    %v756 = vmul.f32 %v755, 0.5
    %v757 = vtanh.pop %v752
    %v758 = vmul.f32 %v756, %v670
    %760 = vrot.lane.b32.xlu0 %v757, 32
    %v761 = vpop.permute.xlu0 %760
    %v763 = vmul.f32 %v756, %v761
    %765 = vrot.lane.b32.xlu0 %v763, 32
    %v766 = vpop.permute.xlu0 %765
    %v768 = vadd.f32 %v758, %v766
    %v769 = vtanh.pop %v768
    %771 = vrot.lane.b32.xlu0 %v769, 32
    %v772 = vpop.permute.xlu0 %771
    %v774 = vmul.f32 %v756, %v772
    %776 = vrot.lane.b32.xlu0 %v774, 64
    %v777 = vpop.permute.xlu0 %776
    %v778 = vsel %vm184, %v777, 0
    %780 = vmatprep.subr.mxu0 0.0
    %781 = vmatpush1.msra.mxu0 0.0
    %782 = vmatprep.subr.mxu0 0.0
    %783 = vmatpush1.msra.mxu0 0.0
    %784 = vmatprep.subr.mxu0 0.0
    %785 = vmatpush1.msra.mxu0 0.0
    %786 = vmatprep.subr.mxu0 0.0
    %787 = vmatpush1.msra.mxu0 0.0
    %788 = vmatprep.subr.mxu0 0.0
    %789 = vmatpush1.msra.mxu0 0.0
    %790 = vmatprep.subr.mxu0 0.0
    %791 = vmatpush1.msra.mxu0 0.0
    %792 = vmatprep.subr.mxu0 0.0
    %793 = vmatpush1.msra.mxu0 0.0
    %794 = vmatprep.subr.mxu0 0.0
    %795 = vmatpush1.msra.mxu0 0.0
    %796 = vmatprep.subr.mxu0 0.0
    %797 = vmatpush1.msra.mxu0 0.0
    %798 = vmatprep.subr.mxu0 0.0
    %799 = vmatpush1.msra.mxu0 0.0
    %800 = vmatprep.subr.mxu0 0.0
    %801 = vmatpush1.msra.mxu0 0.0
    %802 = vmatprep.subr.mxu0 0.0
    %803 = vmatpush1.msra.mxu0 0.0
    %804 = vmatprep.subr.mxu0 0.0
    %805 = vmatpush1.msra.mxu0 %v32
    %806 = vmatprep.subr.mxu0 0.0
    %807 = vmatpush1.msra.mxu0 %v31
    %808 = vmatprep.subr.mxu0 0.0
    %809 = vmatpush1.msra.mxu0 %v30
    %810 = vmatprep.subr.mxu0 0.0
    %811 = vmatpush1.msra.mxu0 %v29
    %812 = vmatprep.subr.mxu0 0.0
    %813 = vmatpush2.msra.mxu0 0.0
    %814 = vmatprep.subr.mxu0 0.0
    %815 = vmatpush2.msra.mxu0 0.0
    %816 = vmatprep.subr.mxu0 0.0
    %817 = vmatpush2.msra.mxu0 0.0
    %818 = vmatprep.subr.mxu0 0.0
    %819 = vmatpush2.msra.mxu0 0.0
    %820 = vmatprep.subr.mxu0 0.0
    %821 = vmatpush2.msra.mxu0 0.0
    %822 = vmatprep.subr.mxu0 0.0
    %823 = vmatpush2.msra.mxu0 0.0
    %824 = vmatprep.subr.mxu0 0.0
    %825 = vmatpush2.msra.mxu0 0.0
    %826 = vmatprep.subr.mxu0 0.0
    %827 = vmatpush2.msra.mxu0 0.0
    %828 = vmatprep.subr.mxu0 0.0
    %829 = vmatpush2.msra.mxu0 0.0
    %830 = vmatprep.subr.mxu0 0.0
    %831 = vmatpush2.msra.mxu0 0.0
    %832 = vmatprep.subr.mxu0 0.0
    %833 = vmatpush2.msra.mxu0 0.0
    %834 = vmatprep.subr.mxu0 0.0
    %835 = vmatpush2.msra.mxu0 0.0
    %836 = vmatprep.subr.mxu0 0.0
    %837 = vmatpush2.msra.mxu0 0.0
    %838 = vmatprep.subr.mxu0 0.0
    %839 = vmatpush2.msra.mxu0 0.0
    %840 = vmatprep.subr.mxu0 0.0
    %841 = vmatpush2.msra.mxu0 0.0
    %842 = vmatprep.subr.mxu0 0.0
    %843 = vmatpush2.msra.mxu0 0.0
    %844 = vmatprep.mubr.f32.mxu0 0.0
    %845 = vmatmul.mubr.f32.gmra.mxu0 %v778
    %v846 = vpop.f32.mrf.mxu0
    %v847 = vadd.f32 0.0, %v846
    %v848 = vpop.f32.mrf.mxu0
    %849 = vdwg.mxu0
    %v850 = vadd.f32 %v174, %v847
    %v851 = vmul.f32 %v850, 0.5
    %v852 = vtanh.pop %v851
    %v853 = vadd.f32 %v852, 1.0
    %v854 = vmul.f32 %v853, 0.5
    %v855 = vtanh.pop %v850
    %v856 = vmul.f32 %v854, %v768
    %858 = vrot.lane.b32.xlu0 %v855, 32
    %v859 = vpop.permute.xlu0 %858
    %v861 = vmul.f32 %v854, %v859
    %863 = vrot.lane.b32.xlu0 %v861, 32
    %v864 = vpop.permute.xlu0 %863
    %v866 = vadd.f32 %v856, %v864
    %v867 = vtanh.pop %v866
    %869 = vrot.lane.b32.xlu0 %v867, 32
    %v870 = vpop.permute.xlu0 %869
    %v872 = vmul.f32 %v854, %v870
    %874 = vrot.lane.b32.xlu0 %v872, 64
    %v875 = vpop.permute.xlu0 %874
    %v876 = vsel %vm184, %v875, 0
    %878 = vmatprep.subr.mxu0 0.0
    %879 = vmatpush1.msra.mxu0 0.0
    %880 = vmatprep.subr.mxu0 0.0
    %881 = vmatpush1.msra.mxu0 0.0
    %882 = vmatprep.subr.mxu0 0.0
    %883 = vmatpush1.msra.mxu0 0.0
    %884 = vmatprep.subr.mxu0 0.0
    %885 = vmatpush1.msra.mxu0 0.0
    %886 = vmatprep.subr.mxu0 0.0
    %887 = vmatpush1.msra.mxu0 0.0
    %888 = vmatprep.subr.mxu0 0.0
    %889 = vmatpush1.msra.mxu0 0.0
    %890 = vmatprep.subr.mxu0 0.0
    %891 = vmatpush1.msra.mxu0 0.0
    %892 = vmatprep.subr.mxu0 0.0
    %893 = vmatpush1.msra.mxu0 0.0
    %894 = vmatprep.subr.mxu0 0.0
    %895 = vmatpush1.msra.mxu0 0.0
    %896 = vmatprep.subr.mxu0 0.0
    %897 = vmatpush1.msra.mxu0 0.0
    %898 = vmatprep.subr.mxu0 0.0
    %899 = vmatpush1.msra.mxu0 0.0
    %900 = vmatprep.subr.mxu0 0.0
    %901 = vmatpush1.msra.mxu0 0.0
    %902 = vmatprep.subr.mxu0 0.0
    %903 = vmatpush1.msra.mxu0 %v32
    %904 = vmatprep.subr.mxu0 0.0
    %905 = vmatpush1.msra.mxu0 %v31
    %906 = vmatprep.subr.mxu0 0.0
    %907 = vmatpush1.msra.mxu0 %v30
    %908 = vmatprep.subr.mxu0 0.0
    %909 = vmatpush1.msra.mxu0 %v29
    %910 = vmatprep.subr.mxu0 0.0
    %911 = vmatpush2.msra.mxu0 0.0
    %912 = vmatprep.subr.mxu0 0.0
    %913 = vmatpush2.msra.mxu0 0.0
    %914 = vmatprep.subr.mxu0 0.0
    %915 = vmatpush2.msra.mxu0 0.0
    %916 = vmatprep.subr.mxu0 0.0
    %917 = vmatpush2.msra.mxu0 0.0
    %918 = vmatprep.subr.mxu0 0.0
    %919 = vmatpush2.msra.mxu0 0.0
    %920 = vmatprep.subr.mxu0 0.0
    %921 = vmatpush2.msra.mxu0 0.0
    %922 = vmatprep.subr.mxu0 0.0
    %923 = vmatpush2.msra.mxu0 0.0
    %924 = vmatprep.subr.mxu0 0.0
    %925 = vmatpush2.msra.mxu0 0.0
    %926 = vmatprep.subr.mxu0 0.0
    %927 = vmatpush2.msra.mxu0 0.0
    %928 = vmatprep.subr.mxu0 0.0
    %929 = vmatpush2.msra.mxu0 0.0
    %930 = vmatprep.subr.mxu0 0.0
    %931 = vmatpush2.msra.mxu0 0.0
    %932 = vmatprep.subr.mxu0 0.0
    %933 = vmatpush2.msra.mxu0 0.0
    %934 = vmatprep.subr.mxu0 0.0
    %935 = vmatpush2.msra.mxu0 0.0
    %936 = vmatprep.subr.mxu0 0.0
    %937 = vmatpush2.msra.mxu0 0.0
    %938 = vmatprep.subr.mxu0 0.0
    %939 = vmatpush2.msra.mxu0 0.0
    %940 = vmatprep.subr.mxu0 0.0
    %941 = vmatpush2.msra.mxu0 0.0
    %942 = vmatprep.mubr.f32.mxu0 0.0
    %943 = vmatmul.mubr.f32.gmra.mxu0 %v876
    %v944 = vpop.f32.mrf.mxu0
    %v945 = vadd.f32 0.0, %v944
    %v946 = vpop.f32.mrf.mxu0
    %947 = vdwg.mxu0
    %v948 = vadd.f32 %v179, %v945
    %v949 = vmul.f32 %v948, 0.5
    %v950 = vtanh.pop %v949
    %v951 = vadd.f32 %v950, 1.0
    %v952 = vmul.f32 %v951, 0.5
    %v953 = vtanh.pop %v948
    %v954 = vmul.f32 %v952, %v866
    %956 = vrot.lane.b32.xlu0 %v953, 32
    %v957 = vpop.permute.xlu0 %956
    %v959 = vmul.f32 %v952, %v957
    %961 = vrot.lane.b32.xlu0 %v959, 32
    %v962 = vpop.permute.xlu0 %961
    %v964 = vadd.f32 %v954, %v962
    %v965 = vtanh.pop %v964
    %967 = vrot.lane.b32.xlu0 %v965, 32
    %v968 = vpop.permute.xlu0 %967
    %v970 = vmul.f32 %v952, %v968
    %972 = vrot.lane.b32.xlu0 %v970, 64
    %v973 = vpop.permute.xlu0 %972
    %975 = vst.msk [vmem:[#allocation2] sm:$0xff] %vm184, %v973
    %977 = vrot.lane.b32.xlu0 %v964, 96
    %v978 = vpop.permute.xlu0 %977
    %980 = vst.msk [vmem:[#allocation4] sm:$0xff] %vm184, %v978
    // Predicated region
    $region22: #{tpu_custom_call.1} parent=1 // pred_check
      _
    $region23: #{tpu_custom_call.1} parent=1 // pred_check_branch
      %982 = sbr.rel (0) target = $region25
    $region24: #{tpu_custom_call.1} parent=1 // pred_region
      %s984 = ssub.s32 128, 128
      %985 = vsyncadd [#allocation3], %s984
      %s987 = sshll.u32 [#allocation2], 4
      %s988 = int_to_ptr.vmem [resolvable:$true] %s987
      %990 = dma.vmem_to_hbm [thread:$0]  %s988, 128, %s4, [#allocation3]
    $region25: #{tpu_custom_call.1} parent=1 // pred_fallthru
      _
    // Predicated region
    $region26: #{tpu_custom_call.1} parent=1 // pred_check
      _
    $region27: #{tpu_custom_call.1} parent=1 // pred_check_branch
      %992 = sbr.rel (0) target = $region29
    $region28: #{tpu_custom_call.1} parent=1 // pred_region
      %s994 = ssub.s32 128, 128
      %995 = vsyncadd [#allocation5], %s994
      %s997 = sshll.u32 [#allocation4], 4
      %s998 = int_to_ptr.vmem [resolvable:$true] %s997
      %1000 = dma.vmem_to_hbm [thread:$0]  %s998, 128, %s5, [#allocation5]
    $region29: #{tpu_custom_call.1} parent=1 // pred_fallthru
      _
    // Predicated region
    $region30: #{tpu_custom_call.1} parent=1 // pred_check
      _
    $region31: #{tpu_custom_call.1} parent=1 // pred_check_branch
      %1002 = sbr.rel (0) target = $region33
    $region32: #{tpu_custom_call.1} parent=1 // pred_region
      %1003 = dma.done [#allocation3], 128
    $region33: #{tpu_custom_call.1} parent=1 // pred_fallthru
      _
    // Predicated region
    $region34: #{tpu_custom_call.1} parent=1 // pred_check
      _
    $region35: #{tpu_custom_call.1} parent=1 // pred_check_branch
      %1005 = sbr.rel (0) target = $region37
    $region36: #{tpu_custom_call.1} parent=1 // pred_region
      %1006 = dma.done [#allocation5], 128
    $region37: #{tpu_custom_call.1} parent=1 // pred_fallthru
      _
    %1007 = vsyncpa [#allocation3], 1
    %1008 = vsyncpa [#allocation5], 1

</llo_original>
